<compile_context>
chip_gen: v7x
topology: tpu7x:2x2x1
jax: 0.10.0
libtpu: 0.0.40
codegen_flags: <defaults>
</compile_context>

<pallas_src>
import jax
import jax.numpy as jnp
from jax.experimental import pallas as pl
from jax.experimental.pallas import tpu as pltpu


def _round_up(x, m):
    return ((x + m - 1) // m) * m


def _ceil_div(a, b):
    return -(-a // b)


def _stable_kernel(xt_ref, w1_ref, w1t_ref, b1_ref, w2n_ref, o_ref):
    xt = xt_ref[...]      # (2n, tile)   MXU dtype (bf16 or f32), batch on lanes
    w1 = w1_ref[...]      # (H, 2n)      MXU dtype
    w1t = w1t_ref[...]    # (2n, H)      MXU dtype
    b1 = b1_ref[...]      # (H, 1)       f32
    w2n = w2n_ref[...]    # (H, 1)       f32, already negated (-w2)

    # z^T = W1 @ x^T + b1 : (H, tile); batch fills the MXU N / lane axis.
    zt = jnp.dot(w1, xt, preferred_element_type=jnp.float32) + b1
    t = jnp.tanh(zt)                                   # lane-dense EUP work, f32
    d1n = w2n * (1.0 - t * t)                          # (-w2) * sech^2(z), f32

    # out^T = W1^T @ d1n^T : (2n, tile) lane-dense store (negation pre-folded).
    o_ref[...] = jnp.dot(w1t, d1n.astype(w1t.dtype),
                         preferred_element_type=jnp.float32)


def stable_forward(x, w1, b1, w2, b2, *, tile_bs=4096, use_bf16_mxu=True):
    """Stable.forward for net = Linear(2n,H) -> Tanh -> Linear(H,1)."""
    del b2  # additive output bias has zero gradient w.r.t. x
    bs, d = x.shape
    hdim = w1.shape[0]

    mxu_dtype = jnp.bfloat16 if use_bf16_mxu else jnp.float32

    # --- layout plumbing: put batch on the lane (last) axis -----------------
    xT = x.astype(jnp.float32).T                             # (d, bs)
    w1_f = w1.astype(jnp.float32)                            # (H, d)
    w1t_f = w1_f.T                                           # (d, H)
    b1c = jnp.reshape(b1, (hdim, 1)).astype(jnp.float32)     # (H, 1)
    w2n = -jnp.reshape(w2, (hdim, 1)).astype(jnp.float32)    # (H, 1), negated

    # --- padding-aware batch tile (lane axis -> multiples of 128) -----------
    n_tiles = max(1, _ceil_div(bs, tile_bs))
    if bs > 256:
        n_tiles = max(n_tiles, 2)   # v7x: >= 2 grid steps so both TCs get work
    tile = _round_up(_ceil_div(bs, n_tiles), 128)
    bs_pad = tile * n_tiles
    if bs_pad != bs:
        xT = jnp.pad(xT, ((0, 0), (0, bs_pad - bs)))

    xT_m = xT.astype(mxu_dtype)
    w1_m = w1_f.astype(mxu_dtype)
    w1t_m = w1t_f.astype(mxu_dtype)

    outT = pl.pallas_call(
        _stable_kernel,
        out_shape=jax.ShapeDtypeStruct((d, bs_pad), jnp.float32),
        grid_spec=pltpu.PrefetchScalarGridSpec(
            num_scalar_prefetch=0,
            grid=(n_tiles,),
            in_specs=[
                pl.BlockSpec((d, tile), lambda i: (0, i)),     # x^T: batch-tiled
                pl.BlockSpec((hdim, d), lambda i: (0, 0)),     # W1: VMEM-resident
                pl.BlockSpec((d, hdim), lambda i: (0, 0)),     # W1^T: VMEM-resident
                pl.BlockSpec((hdim, 1), lambda i: (0, 0)),     # b1
                pl.BlockSpec((hdim, 1), lambda i: (0, 0)),     # -w2
            ],
            out_specs=pl.BlockSpec((d, tile), lambda i: (0, i)),  # out^T lane-dense
        ),
        compiler_params=pltpu.CompilerParams(
            dimension_semantics=("parallel",)),
    )(xT_m, w1_m, w1t_m, b1c, w2n)

    out = outT.T                     # back to (bs_pad, d): layout plumbing only
    return out[:bs] if bs_pad != bs else out


def _reference(x, w1, b1, w2, b2):
    """Pure-JAX autodiff reference mirroring the PyTorch module."""
    def energy_sum(xx):
        return (jnp.tanh(xx @ w1.T + b1) @ w2.T + b2).sum()
    return -jax.grad(energy_sum)(x)


if __name__ == "__main__":
    key = jax.random.PRNGKey(0)
    bs, n, hdim = 8, 4, 32
    k1, k2, k3, k4, k5, k6 = jax.random.split(key, 6)

    x = jax.random.normal(k1, (bs, 2 * n), dtype=jnp.float32)
    lim1 = 1.0 / float(jnp.sqrt(2.0 * n))
    w1 = jax.random.uniform(k2, (hdim, 2 * n), minval=-lim1, maxval=lim1,
                            dtype=jnp.float32)
    b1 = jax.random.uniform(k3, (hdim,), minval=-lim1, maxval=lim1,
                            dtype=jnp.float32)
    lim2 = 1.0 / float(jnp.sqrt(hdim))
    w2 = jax.random.uniform(k4, (1, hdim), minval=-lim2, maxval=lim2,
                            dtype=jnp.float32)
    b2 = jax.random.uniform(k5, (1,), minval=-lim2, maxval=lim2,
                            dtype=jnp.float32)

    ref = _reference(x, w1, b1, w2, b2)

    # Bit-accurate f32-MXU path.
    out_f32 = jax.block_until_ready(
        stable_forward(x, w1, b1, w2, b2, use_bf16_mxu=False))
    err_f32 = float(jnp.max(jnp.abs(out_f32 - ref)) / (1.0 + jnp.max(jnp.abs(ref))))
    if not (err_f32 < 1e-3):
        raise RuntimeError(f"f32 path mismatch vs autodiff ref (err={err_f32})")

    # Default fast path: bf16 MXU operands, f32 accumulation + f32 tanh/sech^2.
    out_bf = jax.block_until_ready(stable_forward(x, w1, b1, w2, b2))
    err_bf = float(jnp.max(jnp.abs(out_bf - ref)) / (1.0 + jnp.max(jnp.abs(ref))))
    if not (err_bf < 5e-3):
        raise RuntimeError(f"bf16-MXU path mismatch vs autodiff ref (err={err_bf})")

    # Non-multiple-of-128 batch > 256: exercises padding + >=2-step grid (v7x).
    bs2 = 300
    x2 = jax.random.normal(k6, (bs2, 2 * n), dtype=jnp.float32)
    ref2 = _reference(x2, w1, b1, w2, b2)
    out2 = jax.block_until_ready(stable_forward(x2, w1, b1, w2, b2))
    err2 = float(jnp.max(jnp.abs(out2 - ref2)) / (1.0 + jnp.max(jnp.abs(ref2))))
    if not (err2 < 5e-3):
        raise RuntimeError(f"padded/multi-tile path mismatch (err={err2})")

    print("KERNEL_OK")
</pallas_src>

<mosaic_0001>
module attributes {stable_mosaic.version = 11 : i64} {
  func.func @_stable_kernel(%arg0: i32, %arg1: memref<8x128xf32, #tpu.memory_space<vmem>>, %arg2: memref<32x8xf32, #tpu.memory_space<vmem>>, %arg3: memref<8x32xf32, #tpu.memory_space<vmem>>, %arg4: memref<32x1xf32, #tpu.memory_space<vmem>>, %arg5: memref<32x1xf32, #tpu.memory_space<vmem>>, %arg6: memref<8x128xf32, #tpu.memory_space<vmem>>) attributes {dimension_semantics = [#tpu.dimension_semantics<parallel>], iteration_bounds = array<i64: 1>, scalar_prefetch = 0 : i64, scratch_operands = 0 : i64, tpu.core_type = #tpu.core_type<tc>, window_params = [{transform_indices = @transform_0, window_bounds = array<i64: 8, 128>}, {pipeline_mode = #tpu.pipeline_mode<synchronous>, transform_indices = @transform_1, window_bounds = array<i64: 32, 8>}, {pipeline_mode = #tpu.pipeline_mode<synchronous>, transform_indices = @transform_2, window_bounds = array<i64: 8, 32>}, {pipeline_mode = #tpu.pipeline_mode<synchronous>, transform_indices = @transform_3, window_bounds = array<i64: 32, 1>}, {pipeline_mode = #tpu.pipeline_mode<synchronous>, transform_indices = @transform_4, window_bounds = array<i64: 32, 1>}, {transform_indices = @transform_5, window_bounds = array<i64: 8, 128>}]} {
    %c0 = arith.constant 0 : index
    %c0_0 = arith.constant 0 : index
    %0 = vector.load %arg1[%c0, %c0_0] : memref<8x128xf32, #tpu.memory_space<vmem>>, vector<8x128xf32>
    %c0_1 = arith.constant 0 : index
    %c0_2 = arith.constant 0 : index
    %1 = vector.load %arg2[%c0_1, %c0_2] : memref<32x8xf32, #tpu.memory_space<vmem>>, vector<32x8xf32>
    %c0_3 = arith.constant 0 : index
    %c0_4 = arith.constant 0 : index
    %2 = vector.load %arg3[%c0_3, %c0_4] : memref<8x32xf32, #tpu.memory_space<vmem>>, vector<8x32xf32>
    %c0_5 = arith.constant 0 : index
    %c0_6 = arith.constant 0 : index
    %3 = vector.load %arg4[%c0_5, %c0_6] : memref<32x1xf32, #tpu.memory_space<vmem>>, vector<32x1xf32>
    %c0_7 = arith.constant 0 : index
    %c0_8 = arith.constant 0 : index
    %4 = vector.load %arg5[%c0_7, %c0_8] : memref<32x1xf32, #tpu.memory_space<vmem>>, vector<32x1xf32>
    %cst = arith.constant dense<0.000000e+00> : vector<32x128xf32>
    %5 = tpu.matmul %1, %0, %cst {dimension_numbers = #tpu.dot_dimension_numbers<[1], [0], [0], [1], [0, 0, 1, 1], [], []>} : vector<32x8xf32>, vector<8x128xf32>, vector<32x128xf32> -> vector<32x128xf32>
    %6 = vector.broadcast %3 : vector<32x1xf32> to vector<32x128xf32>
    %7 = arith.addf %5, %6 : vector<32x128xf32>
    %8 = math.tanh %7 : vector<32x128xf32>
    %9 = arith.mulf %8, %8 : vector<32x128xf32>
    %cst_9 = arith.constant 1.000000e+00 : f32
    %10 = vector.broadcast %cst_9 : f32 to vector<32x128xf32>
    %11 = arith.subf %10, %9 : vector<32x128xf32>
    %12 = vector.broadcast %4 : vector<32x1xf32> to vector<32x128xf32>
    %13 = arith.mulf %12, %11 : vector<32x128xf32>
    %cst_10 = arith.constant dense<0.000000e+00> : vector<8x128xf32>
    %14 = tpu.matmul %2, %13, %cst_10 {dimension_numbers = #tpu.dot_dimension_numbers<[1], [0], [0], [1], [0, 0, 1, 1], [], []>} : vector<8x32xf32>, vector<32x128xf32>, vector<8x128xf32> -> vector<8x128xf32>
    %c0_11 = arith.constant 0 : index
    %c0_12 = arith.constant 0 : index
    %15 = vector.load %arg6[%c0_11, %c0_12] : memref<8x128xf32, #tpu.memory_space<vmem>>, vector<8x128xf32>
    tpu.vector_store %arg6[%c0_11, %c0_12], %14 {strides = array<i32>} : memref<8x128xf32, #tpu.memory_space<vmem>>, vector<8x128xf32>,
    return
  }
  func.func @transform_0(%arg0: i32) -> (i32, i32) {
    %c0_i32 = arith.constant 0 : i32
    %c0_i32_0 = arith.constant 0 : i32
    return %c0_i32, %arg0 : i32, i32
  }
  func.func @transform_1(%arg0: i32) -> (i32, i32) {
    %c0_i32 = arith.constant 0 : i32
    %c0_i32_0 = arith.constant 0 : i32
    %c0_i32_1 = arith.constant 0 : i32
    return %c0_i32, %c0_i32_0 : i32, i32
  }
  func.func @transform_2(%arg0: i32) -> (i32, i32) {
    %c0_i32 = arith.constant 0 : i32
    %c0_i32_0 = arith.constant 0 : i32
    %c0_i32_1 = arith.constant 0 : i32
    return %c0_i32, %c0_i32_0 : i32, i32
  }
  func.func @transform_3(%arg0: i32) -> (i32, i32) {
    %c0_i32 = arith.constant 0 : i32
    %c0_i32_0 = arith.constant 0 : i32
    %c0_i32_1 = arith.constant 0 : i32
    return %c0_i32, %c0_i32_0 : i32, i32
  }
  func.func @transform_4(%arg0: i32) -> (i32, i32) {
    %c0_i32 = arith.constant 0 : i32
    %c0_i32_0 = arith.constant 0 : i32
    %c0_i32_1 = arith.constant 0 : i32
    return %c0_i32, %c0_i32_0 : i32, i32
  }
  func.func @transform_5(%arg0: i32) -> (i32, i32) {
    %c0_i32 = arith.constant 0 : i32
    %c0_i32_0 = arith.constant 0 : i32
    return %c0_i32, %arg0 : i32, i32
  }
}

</mosaic_0001>

<llo_original>
// kernel: tpu_custom_call.1
$region0: #{tpu_custom_call.1}
  #allocation0 [shape = 'u32[]', space=smem, size = 0x4, offset = 0x4, fixed_abs, tag = 'smem constant byte address 0x4 - core index']
  #allocation1 [shape = 'u32[144,128]{1,0:T(1,128)}', space=vmem, size = 0x12000, scoped, tag = 'internal scratch']
  %s0 = inlined_call_operand.vmem [shape: f32[8,128], index: 0, kind: input, shape index: {}]
  %s1 = inlined_call_operand.vmem [shape: f32[32,8], index: 1, kind: input, shape index: {}]
  %s2 = inlined_call_operand.vmem [shape: f32[8,32], index: 2, kind: input, shape index: {}]
  %s3 = inlined_call_operand.vmem [shape: f32[32,1], index: 3, kind: input, shape index: {}]
  %s4 = inlined_call_operand.vmem [shape: f32[32,1], index: 4, kind: input, shape index: {}]
  %s5 = inlined_call_operand.hbm [shape: f32[8,128], index: 5, kind: output, shape index: {}]
  %s6 = sld [smem:[#allocation0]]
  $region30: #{tpu_custom_call.1} parent=0
    _
  %s8 = ssub.s32 1, %s6
  %s9 = scalar_select 0, %s8, %s6
  $region1: #{tpu_custom_call.1} parent=0
    #allocation2 [shape = 'u8[4096]{0}', space=vmem, size = 0x1000, scoped, tag = 'output window, operand 0, single buffered']
    #allocation3 [shape = 's32[1]{0}', space=sflag, size = 0x4, scoped, tag = 'scoped memory for tpu_custom_call.1']
    %10 = vsyncpa [#allocation3], 0
    // Predicated region
    $region2: #{tpu_custom_call.1} parent=1 // pred_check
      _
    $region3: #{tpu_custom_call.1} parent=1 // pred_check_branch
      %12 = sbr.rel (0) target = $region5
    $region4: #{tpu_custom_call.1} parent=1 // pred_region
      _
    $region5: #{tpu_custom_call.1} parent=1 // pred_fallthru
      _
    // Predicated region
    $region6: #{tpu_custom_call.1} parent=1 // pred_check
      _
    $region7: #{tpu_custom_call.1} parent=1 // pred_check_branch
      %14 = sbr.rel (0) target = $region9
    $region8: #{tpu_custom_call.1} parent=1 // pred_region
      _
    $region9: #{tpu_custom_call.1} parent=1 // pred_fallthru
      _
    // Predicated region
    $region10: #{tpu_custom_call.1} parent=1 // pred_check
      _
    $region11: #{tpu_custom_call.1} parent=1 // pred_check_branch
      %16 = sbr.rel (0) target = $region13
    $region12: #{tpu_custom_call.1} parent=1 // pred_region
      _
    $region13: #{tpu_custom_call.1} parent=1 // pred_fallthru
      _
    // Predicated region
    $region14: #{tpu_custom_call.1} parent=1 // pred_check
      _
    $region15: #{tpu_custom_call.1} parent=1 // pred_check_branch
      %18 = sbr.rel (0) target = $region17
    $region16: #{tpu_custom_call.1} parent=1 // pred_region
      _
    $region17: #{tpu_custom_call.1} parent=1 // pred_fallthru
      _
    // Predicated region
    $region18: #{tpu_custom_call.1} parent=1 // pred_check
      _
    $region19: #{tpu_custom_call.1} parent=1 // pred_check_branch
      %20 = sbr.rel (0) target = $region21
    $region20: #{tpu_custom_call.1} parent=1 // pred_region
      _
    $region21: #{tpu_custom_call.1} parent=1 // pred_fallthru
      _
    %v21 = vld [vmem:[%s0] sm:$0xff]
    %v22 = vld [vmem:[%s1] sm:$0xff]
    %v23 = vld [vmem:[%s1 + $0x8] sm:$0xff]
    %v24 = vld [vmem:[%s1 + $0x10] sm:$0xff]
    %v25 = vld [vmem:[%s1 + $0x18] sm:$0xff]
    %v26 = vld [vmem:[%s2] sm:$0xff]
    %v27 = vld [vmem:[%s3] sm:$0xff]
    %v28 = vld [vmem:[%s3 + $0x8] sm:$0xff]
    %v29 = vld [vmem:[%s3 + $0x10] sm:$0xff]
    %v30 = vld [vmem:[%s3 + $0x18] sm:$0xff]
    %v31 = vld [vmem:[%s4] sm:$0xff]
    %v32 = vld [vmem:[%s4 + $0x8] sm:$0xff]
    %v33 = vld [vmem:[%s4 + $0x10] sm:$0xff]
    %v34 = vld [vmem:[%s4 + $0x18] sm:$0xff]
    %36 = vset.pattern.permute.xlu0 0
    %37 = vperm.xlu0 %36, %v27
    %v38 = vpop.permute.xlu0 %37
    %41 = vset.pattern.permute.xlu0 0
    %42 = vperm.xlu0 %41, %v28
    %v43 = vpop.permute.xlu0 %42
    %46 = vset.pattern.permute.xlu0 0
    %47 = vperm.xlu0 %46, %v29
    %v48 = vpop.permute.xlu0 %47
    %51 = vset.pattern.permute.xlu0 0
    %52 = vperm.xlu0 %51, %v30
    %v53 = vpop.permute.xlu0 %52
    %vm55 = vcmask 64512
    %v57 = vsel %vm55, %v22, 0
    %v60 = vsel %vm55, %v23, 0
    %v63 = vsel %vm55, %v24, 0
    %v66 = vsel %vm55, %v25, 0
    %68 = vmatprep.subr.mxu0 0.0
    %69 = vmatpush1.msra.mxu0 %v21
    %70 = vmatprep.subr.mxu0 0.0
    %71 = vmatpush1.msra.mxu0 0.0
    %72 = vmatprep.subr.mxu0 0.0
    %73 = vmatpush1.msra.mxu0 0.0
    %74 = vmatprep.subr.mxu0 0.0
    %75 = vmatpush1.msra.mxu0 0.0
    %76 = vmatprep.subr.mxu0 0.0
    %77 = vmatpush1.msra.mxu0 0.0
    %78 = vmatprep.subr.mxu0 0.0
    %79 = vmatpush1.msra.mxu0 0.0
    %80 = vmatprep.subr.mxu0 0.0
    %81 = vmatpush1.msra.mxu0 0.0
    %82 = vmatprep.subr.mxu0 0.0
    %83 = vmatpush1.msra.mxu0 0.0
    %84 = vmatprep.subr.mxu0 0.0
    %85 = vmatpush1.msra.mxu0 0.0
    %86 = vmatprep.subr.mxu0 0.0
    %87 = vmatpush1.msra.mxu0 0.0
    %88 = vmatprep.subr.mxu0 0.0
    %89 = vmatpush1.msra.mxu0 0.0
    %90 = vmatprep.subr.mxu0 0.0
    %91 = vmatpush1.msra.mxu0 0.0
    %92 = vmatprep.subr.mxu0 0.0
    %93 = vmatpush1.msra.mxu0 0.0
    %94 = vmatprep.subr.mxu0 0.0
    %95 = vmatpush1.msra.mxu0 0.0
    %96 = vmatprep.subr.mxu0 0.0
    %97 = vmatpush1.msra.mxu0 0.0
    %98 = vmatprep.subr.mxu0 0.0
    %99 = vmatpush1.msra.mxu0 0.0
    %100 = vmatprep.subr.mxu0 0.0
    %101 = vmatpush1.msra.mxu0 0.0
    %102 = vmatprep.subr.mxu0 0.0
    %103 = vmatpush1.msra.mxu0 0.0
    %104 = vmatprep.subr.mxu0 0.0
    %105 = vmatpush1.msra.mxu0 0.0
    %106 = vmatprep.subr.mxu0 0.0
    %107 = vmatpush1.msra.mxu0 0.0
    %108 = vmatprep.subr.mxu0 0.0
    %109 = vmatpush1.msra.mxu0 0.0
    %110 = vmatprep.subr.mxu0 0.0
    %111 = vmatpush1.msra.mxu0 0.0
    %112 = vmatprep.subr.mxu0 0.0
    %113 = vmatpush1.msra.mxu0 0.0
    %114 = vmatprep.subr.mxu0 0.0
    %115 = vmatpush1.msra.mxu0 0.0
    %116 = vmatprep.subr.mxu0 0.0
    %117 = vmatpush1.msra.mxu0 0.0
    %118 = vmatprep.subr.mxu0 0.0
    %119 = vmatpush1.msra.mxu0 0.0
    %120 = vmatprep.subr.mxu0 0.0
    %121 = vmatpush1.msra.mxu0 0.0
    %122 = vmatprep.subr.mxu0 0.0
    %123 = vmatpush1.msra.mxu0 0.0
    %124 = vmatprep.subr.mxu0 0.0
    %125 = vmatpush1.msra.mxu0 0.0
    %126 = vmatprep.subr.mxu0 0.0
    %127 = vmatpush1.msra.mxu0 0.0
    %128 = vmatprep.subr.mxu0 0.0
    %129 = vmatpush1.msra.mxu0 0.0
    %130 = vmatprep.subr.mxu0 0.0
    %131 = vmatpush1.msra.mxu0 0.0
    %132 = vmatprep.mubr.f32.mxu0 0.0
    %133 = vmatmul.mubr.f32.gmra.mrb[0].mxu0 %v57
    %v134 = vpop.f32.mrb[0].mxu0
    %v135 = vadd.f32 %v38, %v134
    %v136 = vpop.f32.mrb[0].mxu0
    %137 = vmatprep.mubr.f32.mxu0 0.0
    %138 = vmatmul.mubr.f32.gmra.mrb[0].mxu0 %v60
    %v139 = vpop.f32.mrb[0].mxu0
    %v140 = vadd.f32 %v43, %v139
    %v141 = vpop.f32.mrb[0].mxu0
    %142 = vmatprep.mubr.f32.mxu0 0.0
    %143 = vmatmul.mubr.f32.gmra.mrb[0].mxu0 %v63
    %v144 = vpop.f32.mrb[0].mxu0
    %v145 = vadd.f32 %v48, %v144
    %v146 = vpop.f32.mrb[0].mxu0
    %147 = vmatprep.mubr.f32.mxu0 0.0
    %148 = vmatmul.mubr.f32.gmra.mrb[0].mxu0 %v66
    %v149 = vpop.f32.mrb[0].mxu0
    %v150 = vadd.f32 %v53, %v149
    %v151 = vpop.f32.mrb[0].mxu0
    %152 = vdwg.mxu0
    %v153 = vtanh.pop %v135
    %v154 = vtanh.pop %v140
    %v155 = vtanh.pop %v145
    %v156 = vtanh.pop %v150
    %v157 = vmul.f32 %v153, %v153
    %v158 = vmul.f32 %v154, %v154
    %v159 = vmul.f32 %v155, %v155
    %v160 = vmul.f32 %v156, %v156
    %v161 = vsub.f32 1.0, %v157
    %v162 = vsub.f32 1.0, %v158
    %v163 = vsub.f32 1.0, %v159
    %v164 = vsub.f32 1.0, %v160
    %166 = vset.pattern.permute.xlu0 0
    %167 = vperm.xlu0 %166, %v31
    %v168 = vpop.permute.xlu0 %167
    %171 = vset.pattern.permute.xlu0 0
    %172 = vperm.xlu0 %171, %v32
    %v173 = vpop.permute.xlu0 %172
    %176 = vset.pattern.permute.xlu0 0
    %177 = vperm.xlu0 %176, %v33
    %v178 = vpop.permute.xlu0 %177
    %181 = vset.pattern.permute.xlu0 0
    %182 = vperm.xlu0 %181, %v34
    %v183 = vpop.permute.xlu0 %182
    %v185 = vmul.f32 %v168, %v161
    %v186 = vmul.f32 %v173, %v162
    %v187 = vmul.f32 %v178, %v163
    %v188 = vmul.f32 %v183, %v164
    %vm189 = vcmask 261120
    %v191 = vsel %vm189, %v26, 0
    %193 = vmatprep.subr.mxu0 0.0
    %194 = vmatpush1.msra.mxu0 %v185
    %195 = vmatprep.subr.mxu0 0.0
    %196 = vmatpush1.msra.mxu0 %v186
    %197 = vmatprep.subr.mxu0 0.0
    %198 = vmatpush1.msra.mxu0 %v187
    %199 = vmatprep.subr.mxu0 0.0
    %200 = vmatpush1.msra.mxu0 %v188
    %201 = vmatprep.subr.mxu0 0.0
    %202 = vmatpush1.msra.mxu0 0.0
    %203 = vmatprep.subr.mxu0 0.0
    %204 = vmatpush1.msra.mxu0 0.0
    %205 = vmatprep.subr.mxu0 0.0
    %206 = vmatpush1.msra.mxu0 0.0
    %207 = vmatprep.subr.mxu0 0.0
    %208 = vmatpush1.msra.mxu0 0.0
    %209 = vmatprep.subr.mxu0 0.0
    %210 = vmatpush1.msra.mxu0 0.0
    %211 = vmatprep.subr.mxu0 0.0
    %212 = vmatpush1.msra.mxu0 0.0
    %213 = vmatprep.subr.mxu0 0.0
    %214 = vmatpush1.msra.mxu0 0.0
    %215 = vmatprep.subr.mxu0 0.0
    %216 = vmatpush1.msra.mxu0 0.0
    %217 = vmatprep.subr.mxu0 0.0
    %218 = vmatpush1.msra.mxu0 0.0
    %219 = vmatprep.subr.mxu0 0.0
    %220 = vmatpush1.msra.mxu0 0.0
    %221 = vmatprep.subr.mxu0 0.0
    %222 = vmatpush1.msra.mxu0 0.0
    %223 = vmatprep.subr.mxu0 0.0
    %224 = vmatpush1.msra.mxu0 0.0
    %225 = vmatprep.subr.mxu0 0.0
    %226 = vmatpush1.msra.mxu0 0.0
    %227 = vmatprep.subr.mxu0 0.0
    %228 = vmatpush1.msra.mxu0 0.0
    %229 = vmatprep.subr.mxu0 0.0
    %230 = vmatpush1.msra.mxu0 0.0
    %231 = vmatprep.subr.mxu0 0.0
    %232 = vmatpush1.msra.mxu0 0.0
    %233 = vmatprep.subr.mxu0 0.0
    %234 = vmatpush1.msra.mxu0 0.0
    %235 = vmatprep.subr.mxu0 0.0
    %236 = vmatpush1.msra.mxu0 0.0
    %237 = vmatprep.subr.mxu0 0.0
    %238 = vmatpush1.msra.mxu0 0.0
    %239 = vmatprep.subr.mxu0 0.0
    %240 = vmatpush1.msra.mxu0 0.0
    %241 = vmatprep.subr.mxu0 0.0
    %242 = vmatpush1.msra.mxu0 0.0
    %243 = vmatprep.subr.mxu0 0.0
    %244 = vmatpush1.msra.mxu0 0.0
    %245 = vmatprep.subr.mxu0 0.0
    %246 = vmatpush1.msra.mxu0 0.0
    %247 = vmatprep.subr.mxu0 0.0
    %248 = vmatpush1.msra.mxu0 0.0
    %249 = vmatprep.subr.mxu0 0.0
    %250 = vmatpush1.msra.mxu0 0.0
    %251 = vmatprep.subr.mxu0 0.0
    %252 = vmatpush1.msra.mxu0 0.0
    %253 = vmatprep.subr.mxu0 0.0
    %254 = vmatpush1.msra.mxu0 0.0
    %255 = vmatprep.subr.mxu0 0.0
    %256 = vmatpush1.msra.mxu0 0.0
    %257 = vmatprep.mubr.f32.mxu0 0.0
    %258 = vmatmul.mubr.f32.gmra.mrb[0].mxu0 %v191
    %v259 = vpop.f32.mrb[0].mxu0
    %v260 = vadd.f32 0.0, %v259
    %v261 = vpop.f32.mrb[0].mxu0
    %262 = vdwg.mxu0
    %263 = vst [vmem:[#allocation2] sm:$0xff] %v260
    // Predicated region
    $region22: #{tpu_custom_call.1} parent=1 // pred_check
      _
    $region23: #{tpu_custom_call.1} parent=1 // pred_check_branch
      %265 = sbr.rel (0) target = $region25
    $region24: #{tpu_custom_call.1} parent=1 // pred_region
      %s267 = ssub.s32 128, 128
      %268 = vsyncadd [#allocation3], %s267
      %s270 = sshll.u32 [#allocation2], 4
      %s271 = int_to_ptr.vmem [resolvable:$true] %s270
      %273 = dma.vmem_to_hbm [thread:$0]  %s271, 128, %s5, [#allocation3]
    $region25: #{tpu_custom_call.1} parent=1 // pred_fallthru
      _
    // Predicated region
    $region26: #{tpu_custom_call.1} parent=1 // pred_check
      _
    $region27: #{tpu_custom_call.1} parent=1 // pred_check_branch
      %275 = sbr.rel (0) target = $region29
    $region28: #{tpu_custom_call.1} parent=1 // pred_region
      %276 = dma.done [#allocation3], 128
    $region29: #{tpu_custom_call.1} parent=1 // pred_fallthru
      _
    %277 = vsyncpa [#allocation3], 1

</llo_original>
